<compile_context>
chip_gen: v5e
topology: v5e:2x2
jax: 0.10.0
libtpu: 0.0.40
codegen_flags: <defaults>
</compile_context>

<pallas_src>
import jax
import jax.numpy as jnp
from jax.experimental import pallas as pl
from jax.experimental.pallas import tpu as pltpu

LANE = 128      # TPU vreg lane width
SUBLANE = 8     # TPU vreg sublane count (f32)


def _cdiv(a: int, b: int) -> int:
    return (a + b - 1) // b


def _round_up(v: int, m: int) -> int:
    return _cdiv(v, m) * m


# ---------------------------------------------------------------------------
# Fused kernel: the whole autoencoder in one pallas_call
# ---------------------------------------------------------------------------
def _make_fused_kernel(layer_dims, layer_is_alg):
    """layer_dims: tuple of (in_l, out_l); layer_is_alg: tuple of bool."""
    n_layers = len(layer_dims)

    def kernel(*refs):
        # refs = (x_ref, w_ref_0, ..., w_ref_{L-1}, o_ref)
        #   x_ref : (in_features, r_tile, LANE)   VMEM, feature-major batch tile
        #   w_ref : 1-D f32 SMEM per layer:
        #             fuzzy_alg   layer -> (out_l,)         = prod_i prob[o,i,1]
        #             fuzzy_coalg layer -> (out_l * in_l,)  = prob[o,i,1] row-major
        #   o_ref : (out_features, r_tile, LANE)  VMEM
        x_ref = refs[0]
        w_refs = refs[1:1 + n_layers]
        o_ref = refs[1 + n_layers]

        # Activations are a Python list of per-feature (r_tile, LANE) slabs.
        # Everything below is either a full-vreg elementwise op or an
        # SMEM-scalar * vector broadcast: no reductions across lanes/sublanes,
        # no relayouts, no masking, no transcendentals.
        h = [x_ref[i] for i in range(layer_dims[0][0])]

        for l in range(n_layers):
            in_l, out_l = layer_dims[l]
            w_ref = w_refs[l]
            if layer_is_alg[l]:
                # fuzzy_alg: out[o] = prod_i(x_i * p_oi)
                #          = (prod_i x_i) * (prod_i p_oi)   [p-product hoisted]
                x_prod = h[0]
                for i in range(1, in_l):
                    x_prod = x_prod * h[i]
                h = [w_ref[o] * x_prod for o in range(out_l)]
            else:
                # fuzzy_coalg: out[o] = 1 - prod_i(1 - x_i * p_oi)
                nxt = []
                for o in range(out_l):
                    acc = 1.0 - w_ref[o * in_l] * h[0]
                    for i in range(1, in_l):
                        acc = acc * (1.0 - w_ref[o * in_l + i] * h[i])
                    nxt.append(1.0 - acc)
                h = nxt

        for o in range(layer_dims[-1][1]):
            o_ref[o] = h[o]

    return kernel


# ---------------------------------------------------------------------------
# Parameter packing: ALL weight-side work, done once outside the kernel
# ---------------------------------------------------------------------------
def pack_params(params, layer_is_alg, is_train):
    """Returns one small flat f32 vector per layer:
         fuzzy_alg   layer -> (out_l,)        prod_i prob[o, i, 1]
         fuzzy_coalg layer -> (out_l * in_l,) prob[o, i, 1]  (row-major)
       prob[...,1] = softmax(w,-1)[...,1] (train) / one_hot(argmax)[...,1] (eval;
       argmax ties resolve to index 0 == no_edge, matching torch)."""
    packed = []
    for w, is_alg in zip(params, layer_is_alg):
        w = jnp.asarray(w, jnp.float32)
        if is_train:
            p1 = jax.nn.softmax(w, axis=-1)[..., 1]                 # (out, in)
        else:
            p1 = (jnp.argmax(w, axis=-1) == 1).astype(jnp.float32)  # (out, in)
        packed.append(jnp.prod(p1, axis=-1) if is_alg else p1.reshape(-1))
    return packed


# ---------------------------------------------------------------------------
# Wrapper: builds the fused pallas_call for a given config
# ---------------------------------------------------------------------------
def make_autoencoder_forward(in_features, hidden_sizes, batch):
    layer_sizes = [in_features, *hidden_sizes, in_features]
    n_layers = len(layer_sizes) - 1
    # operators cycle [fuzzy_alg, fuzzy_coalg, fuzzy_alg, ...]
    layer_is_alg = tuple((i % 2) == 0 for i in range(n_layers))
    layer_dims = tuple((layer_sizes[i], layer_sizes[i + 1]) for i in range(n_layers))
    out_features = layer_sizes[-1]

    # Batch laid out as (rows, LANE): lanes always full 128 (dense unmasked
    # loads/stores); rows tiled in groups of <= 8 sublanes, so one grid step
    # processes up to 1024 batch elements.
    n_rows = max(1, _cdiv(batch, LANE))
    r_tile = SUBLANE if n_rows >= SUBLANE else n_rows
    n_rows_pad = _round_up(n_rows, r_tile)
    n_blocks = n_rows_pad // r_tile          # on v7x keep this >= 2 for megacore
    b_pad = n_rows_pad * LANE

    kernel = _make_fused_kernel(layer_dims, layer_is_alg)

    in_specs = [pl.BlockSpec((in_features, r_tile, LANE), lambda g: (0, g, 0))]
    # Per-layer packed weights: tiny 1-D f32 vectors, read as SMEM scalars.
    in_specs += [pl.BlockSpec(memory_space=pltpu.MemorySpace.SMEM)
                 for _ in range(n_layers)]

    fused = pl.pallas_call(
        kernel,
        grid=(n_blocks,),                     # batch blocks (independent)
        in_specs=in_specs,
        out_specs=pl.BlockSpec((out_features, r_tile, LANE), lambda g: (0, g, 0)),
        out_shape=jax.ShapeDtypeStruct((out_features, n_rows_pad, LANE), jnp.float32),
        compiler_params=pltpu.CompilerParams(
            dimension_semantics=("parallel",),   # shards batch blocks on v7x
        ),
    )

    @jax.jit
    def forward(x, packed):
        # (batch, F) -> feature-major (F, rows, LANE) slab: layout plumbing only.
        xp = jnp.pad(x.astype(jnp.float32), ((0, b_pad - batch), (0, 0)))
        xp = xp.reshape(n_rows_pad, LANE, in_features).transpose(2, 0, 1)
        out = fused(xp, *packed)
        out = out.transpose(1, 2, 0).reshape(b_pad, out_features)
        return out[:batch]

    return forward, layer_is_alg


# ---------------------------------------------------------------------------
# Pure-JAX reference (mirrors the PyTorch forward literally)
# ---------------------------------------------------------------------------
def _ref_layer(x, w, op_is_alg, is_train):
    if is_train:
        prob = jax.nn.softmax(w, axis=-1)
    else:
        prob = jax.nn.one_hot(jnp.argmax(w, axis=-1), 2, dtype=jnp.float32)
    expected = x[:, None, :] * prob[None, :, :, 1]                 # (B, OUT, IN)
    if op_is_alg:
        return jnp.prod(expected, axis=-1)                         # fuzzy_alg
    return 1.0 - jnp.prod(1.0 - expected, axis=-1)                 # fuzzy_coalg


def ref_autoencoder(x, params, layer_is_alg, is_train):
    for w, is_alg in zip(params, layer_is_alg):
        x = _ref_layer(x, w, is_alg, is_train)
    return x


# ---------------------------------------------------------------------------
if __name__ == "__main__":
    key = jax.random.PRNGKey(0)
    key, pkey = jax.random.split(key)

    in_features = 16
    hidden_sizes = [8, 4]
    layer_sizes = [in_features, *hidden_sizes, in_features]

    # prob_weights per layer: (out, in, 2), like torch.randn
    params = []
    for i in range(len(layer_sizes) - 1):
        pkey, sub = jax.random.split(pkey)
        params.append(jax.random.normal(
            sub, (layer_sizes[i + 1], layer_sizes[i], 2), dtype=jnp.float32))

    # TODO(synk): fuzzy_alg / fuzzy_coalg are undefined in the given source; the
    # standard product t-norm / probabilistic-sum t-conorm are assumed.
    # (batch=12: single small block / r_tile=1; batch=2000: 2 blocks, r_tile=8.)
    for batch, is_train in ((12, False), (12, True), (2000, True)):
        key, xkey = jax.random.split(key)
        # fuzzy-logic inputs live in [0, 1]
        x = jax.random.uniform(xkey, (batch, in_features), dtype=jnp.float32)

        fwd, layer_is_alg = make_autoencoder_forward(in_features, hidden_sizes, batch)
        packed = pack_params(params, layer_is_alg, is_train)  # one-time weight prep

        out = jax.block_until_ready(fwd(x, packed))
        ref = ref_autoencoder(x, params, layer_is_alg, is_train)

        assert out.shape == (batch, in_features)
        # tolerance covers the product-factorization reassociation in fuzzy_alg
        assert jnp.allclose(out, ref, rtol=1e-4, atol=1e-5), (
            f"mismatch vs reference (batch={batch}, is_train={is_train}): "
            f"max abs diff {float(jnp.max(jnp.abs(out - ref)))}"
        )

    print("KERNEL_OK")
</pallas_src>

<mosaic_0001>
module attributes {stable_mosaic.version = 11 : i64} {
  func.func @kernel(%arg0: i32, %arg1: memref<16x1x128xf32, #tpu.memory_space<vmem>>, %arg2: memref<8xf32, #tpu.memory_space<smem>>, %arg3: memref<32xf32, #tpu.memory_space<smem>>, %arg4: memref<16xf32, #tpu.memory_space<smem>>, %arg5: memref<16x1x128xf32, #tpu.memory_space<vmem>>) attributes {dimension_semantics = [#tpu.dimension_semantics<parallel>], iteration_bounds = array<i64: 1>, scalar_prefetch = 0 : i64, scratch_operands = 0 : i64, tpu.core_type = #tpu.core_type<tc>, window_params = [{transform_indices = @transform_0, window_bounds = array<i64: 16, 1, 128>}, {transform_indices = @transform_1, window_bounds = array<i64: 8>}, {transform_indices = @transform_2, window_bounds = array<i64: 32>}, {transform_indices = @transform_3, window_bounds = array<i64: 16>}, {transform_indices = @transform_4, window_bounds = array<i64: 16, 1, 128>}]} {
    %c0 = arith.constant 0 : index
    %c0_0 = arith.constant 0 : index
    %c0_1 = arith.constant 0 : index
    %0 = vector.load %arg1[%c0, %c0_0, %c0_1] : memref<16x1x128xf32, #tpu.memory_space<vmem>>, vector<1x1x128xf32>
    %1 = vector.shape_cast %0 : vector<1x1x128xf32> to vector<1x128xf32>
    %c1 = arith.constant 1 : index
    %c0_2 = arith.constant 0 : index
    %c0_3 = arith.constant 0 : index
    %2 = vector.load %arg1[%c1, %c0_2, %c0_3] : memref<16x1x128xf32, #tpu.memory_space<vmem>>, vector<1x1x128xf32>
    %3 = vector.shape_cast %2 : vector<1x1x128xf32> to vector<1x128xf32>
    %c2 = arith.constant 2 : index
    %c0_4 = arith.constant 0 : index
    %c0_5 = arith.constant 0 : index
    %4 = vector.load %arg1[%c2, %c0_4, %c0_5] : memref<16x1x128xf32, #tpu.memory_space<vmem>>, vector<1x1x128xf32>
    %5 = vector.shape_cast %4 : vector<1x1x128xf32> to vector<1x128xf32>
    %c3 = arith.constant 3 : index
    %c0_6 = arith.constant 0 : index
    %c0_7 = arith.constant 0 : index
    %6 = vector.load %arg1[%c3, %c0_6, %c0_7] : memref<16x1x128xf32, #tpu.memory_space<vmem>>, vector<1x1x128xf32>
    %7 = vector.shape_cast %6 : vector<1x1x128xf32> to vector<1x128xf32>
    %c4 = arith.constant 4 : index
    %c0_8 = arith.constant 0 : index
    %c0_9 = arith.constant 0 : index
    %8 = vector.load %arg1[%c4, %c0_8, %c0_9] : memref<16x1x128xf32, #tpu.memory_space<vmem>>, vector<1x1x128xf32>
    %9 = vector.shape_cast %8 : vector<1x1x128xf32> to vector<1x128xf32>
    %c5 = arith.constant 5 : index
    %c0_10 = arith.constant 0 : index
    %c0_11 = arith.constant 0 : index
    %10 = vector.load %arg1[%c5, %c0_10, %c0_11] : memref<16x1x128xf32, #tpu.memory_space<vmem>>, vector<1x1x128xf32>
    %11 = vector.shape_cast %10 : vector<1x1x128xf32> to vector<1x128xf32>
    %c6 = arith.constant 6 : index
    %c0_12 = arith.constant 0 : index
    %c0_13 = arith.constant 0 : index
    %12 = vector.load %arg1[%c6, %c0_12, %c0_13] : memref<16x1x128xf32, #tpu.memory_space<vmem>>, vector<1x1x128xf32>
    %13 = vector.shape_cast %12 : vector<1x1x128xf32> to vector<1x128xf32>
    %c7 = arith.constant 7 : index
    %c0_14 = arith.constant 0 : index
    %c0_15 = arith.constant 0 : index
    %14 = vector.load %arg1[%c7, %c0_14, %c0_15] : memref<16x1x128xf32, #tpu.memory_space<vmem>>, vector<1x1x128xf32>
    %15 = vector.shape_cast %14 : vector<1x1x128xf32> to vector<1x128xf32>
    %c8 = arith.constant 8 : index
    %c0_16 = arith.constant 0 : index
    %c0_17 = arith.constant 0 : index
    %16 = vector.load %arg1[%c8, %c0_16, %c0_17] : memref<16x1x128xf32, #tpu.memory_space<vmem>>, vector<1x1x128xf32>
    %17 = vector.shape_cast %16 : vector<1x1x128xf32> to vector<1x128xf32>
    %c9 = arith.constant 9 : index
    %c0_18 = arith.constant 0 : index
    %c0_19 = arith.constant 0 : index
    %18 = vector.load %arg1[%c9, %c0_18, %c0_19] : memref<16x1x128xf32, #tpu.memory_space<vmem>>, vector<1x1x128xf32>
    %19 = vector.shape_cast %18 : vector<1x1x128xf32> to vector<1x128xf32>
    %c10 = arith.constant 10 : index
    %c0_20 = arith.constant 0 : index
    %c0_21 = arith.constant 0 : index
    %20 = vector.load %arg1[%c10, %c0_20, %c0_21] : memref<16x1x128xf32, #tpu.memory_space<vmem>>, vector<1x1x128xf32>
    %21 = vector.shape_cast %20 : vector<1x1x128xf32> to vector<1x128xf32>
    %c11 = arith.constant 11 : index
    %c0_22 = arith.constant 0 : index
    %c0_23 = arith.constant 0 : index
    %22 = vector.load %arg1[%c11, %c0_22, %c0_23] : memref<16x1x128xf32, #tpu.memory_space<vmem>>, vector<1x1x128xf32>
    %23 = vector.shape_cast %22 : vector<1x1x128xf32> to vector<1x128xf32>
    %c12 = arith.constant 12 : index
    %c0_24 = arith.constant 0 : index
    %c0_25 = arith.constant 0 : index
    %24 = vector.load %arg1[%c12, %c0_24, %c0_25] : memref<16x1x128xf32, #tpu.memory_space<vmem>>, vector<1x1x128xf32>
    %25 = vector.shape_cast %24 : vector<1x1x128xf32> to vector<1x128xf32>
    %c13 = arith.constant 13 : index
    %c0_26 = arith.constant 0 : index
    %c0_27 = arith.constant 0 : index
    %26 = vector.load %arg1[%c13, %c0_26, %c0_27] : memref<16x1x128xf32, #tpu.memory_space<vmem>>, vector<1x1x128xf32>
    %27 = vector.shape_cast %26 : vector<1x1x128xf32> to vector<1x128xf32>
    %c14 = arith.constant 14 : index
    %c0_28 = arith.constant 0 : index
    %c0_29 = arith.constant 0 : index
    %28 = vector.load %arg1[%c14, %c0_28, %c0_29] : memref<16x1x128xf32, #tpu.memory_space<vmem>>, vector<1x1x128xf32>
    %29 = vector.shape_cast %28 : vector<1x1x128xf32> to vector<1x128xf32>
    %c15 = arith.constant 15 : index
    %c0_30 = arith.constant 0 : index
    %c0_31 = arith.constant 0 : index
    %30 = vector.load %arg1[%c15, %c0_30, %c0_31] : memref<16x1x128xf32, #tpu.memory_space<vmem>>, vector<1x1x128xf32>
    %31 = vector.shape_cast %30 : vector<1x1x128xf32> to vector<1x128xf32>
    %32 = arith.mulf %1, %3 : vector<1x128xf32>
    %33 = arith.mulf %32, %5 : vector<1x128xf32>
    %34 = arith.mulf %33, %7 : vector<1x128xf32>
    %35 = arith.mulf %34, %9 : vector<1x128xf32>
    %36 = arith.mulf %35, %11 : vector<1x128xf32>
    %37 = arith.mulf %36, %13 : vector<1x128xf32>
    %38 = arith.mulf %37, %15 : vector<1x128xf32>
    %39 = arith.mulf %38, %17 : vector<1x128xf32>
    %40 = arith.mulf %39, %19 : vector<1x128xf32>
    %41 = arith.mulf %40, %21 : vector<1x128xf32>
    %42 = arith.mulf %41, %23 : vector<1x128xf32>
    %43 = arith.mulf %42, %25 : vector<1x128xf32>
    %44 = arith.mulf %43, %27 : vector<1x128xf32>
    %45 = arith.mulf %44, %29 : vector<1x128xf32>
    %46 = arith.mulf %45, %31 : vector<1x128xf32>
    %c0_32 = arith.constant 0 : index
    %47 = memref.load %arg2[%c0_32] : memref<8xf32, #tpu.memory_space<smem>>
    %48 = vector.broadcast %47 : f32 to vector<1x128xf32>
    %49 = arith.mulf %48, %46 : vector<1x128xf32>
    %c1_33 = arith.constant 1 : index
    %50 = memref.load %arg2[%c1_33] : memref<8xf32, #tpu.memory_space<smem>>
    %51 = vector.broadcast %50 : f32 to vector<1x128xf32>
    %52 = arith.mulf %51, %46 : vector<1x128xf32>
    %c2_34 = arith.constant 2 : index
    %53 = memref.load %arg2[%c2_34] : memref<8xf32, #tpu.memory_space<smem>>
    %54 = vector.broadcast %53 : f32 to vector<1x128xf32>
    %55 = arith.mulf %54, %46 : vector<1x128xf32>
    %c3_35 = arith.constant 3 : index
    %56 = memref.load %arg2[%c3_35] : memref<8xf32, #tpu.memory_space<smem>>
    %57 = vector.broadcast %56 : f32 to vector<1x128xf32>
    %58 = arith.mulf %57, %46 : vector<1x128xf32>
    %c4_36 = arith.constant 4 : index
    %59 = memref.load %arg2[%c4_36] : memref<8xf32, #tpu.memory_space<smem>>
    %60 = vector.broadcast %59 : f32 to vector<1x128xf32>
    %61 = arith.mulf %60, %46 : vector<1x128xf32>
    %c5_37 = arith.constant 5 : index
    %62 = memref.load %arg2[%c5_37] : memref<8xf32, #tpu.memory_space<smem>>
    %63 = vector.broadcast %62 : f32 to vector<1x128xf32>
    %64 = arith.mulf %63, %46 : vector<1x128xf32>
    %c6_38 = arith.constant 6 : index
    %65 = memref.load %arg2[%c6_38] : memref<8xf32, #tpu.memory_space<smem>>
    %66 = vector.broadcast %65 : f32 to vector<1x128xf32>
    %67 = arith.mulf %66, %46 : vector<1x128xf32>
    %c7_39 = arith.constant 7 : index
    %68 = memref.load %arg2[%c7_39] : memref<8xf32, #tpu.memory_space<smem>>
    %69 = vector.broadcast %68 : f32 to vector<1x128xf32>
    %70 = arith.mulf %69, %46 : vector<1x128xf32>
    %c0_40 = arith.constant 0 : index
    %71 = memref.load %arg3[%c0_40] : memref<32xf32, #tpu.memory_space<smem>>
    %72 = vector.broadcast %71 : f32 to vector<1x128xf32>
    %73 = arith.mulf %72, %49 : vector<1x128xf32>
    %cst = arith.constant 1.000000e+00 : f32
    %74 = vector.broadcast %cst : f32 to vector<1x128xf32>
    %75 = arith.subf %74, %73 : vector<1x128xf32>
    %c1_41 = arith.constant 1 : index
    %76 = memref.load %arg3[%c1_41] : memref<32xf32, #tpu.memory_space<smem>>
    %77 = vector.broadcast %76 : f32 to vector<1x128xf32>
    %78 = arith.mulf %77, %52 : vector<1x128xf32>
    %cst_42 = arith.constant 1.000000e+00 : f32
    %79 = vector.broadcast %cst_42 : f32 to vector<1x128xf32>
    %80 = arith.subf %79, %78 : vector<1x128xf32>
    %81 = arith.mulf %75, %80 : vector<1x128xf32>
    %c2_43 = arith.constant 2 : index
    %82 = memref.load %arg3[%c2_43] : memref<32xf32, #tpu.memory_space<smem>>
    %83 = vector.broadcast %82 : f32 to vector<1x128xf32>
    %84 = arith.mulf %83, %55 : vector<1x128xf32>
    %cst_44 = arith.constant 1.000000e+00 : f32
    %85 = vector.broadcast %cst_44 : f32 to vector<1x128xf32>
    %86 = arith.subf %85, %84 : vector<1x128xf32>
    %87 = arith.mulf %81, %86 : vector<1x128xf32>
    %c3_45 = arith.constant 3 : index
    %88 = memref.load %arg3[%c3_45] : memref<32xf32, #tpu.memory_space<smem>>
    %89 = vector.broadcast %88 : f32 to vector<1x128xf32>
    %90 = arith.mulf %89, %58 : vector<1x128xf32>
    %cst_46 = arith.constant 1.000000e+00 : f32
    %91 = vector.broadcast %cst_46 : f32 to vector<1x128xf32>
    %92 = arith.subf %91, %90 : vector<1x128xf32>
    %93 = arith.mulf %87, %92 : vector<1x128xf32>
    %c4_47 = arith.constant 4 : index
    %94 = memref.load %arg3[%c4_47] : memref<32xf32, #tpu.memory_space<smem>>
    %95 = vector.broadcast %94 : f32 to vector<1x128xf32>
    %96 = arith.mulf %95, %61 : vector<1x128xf32>
    %cst_48 = arith.constant 1.000000e+00 : f32
    %97 = vector.broadcast %cst_48 : f32 to vector<1x128xf32>
    %98 = arith.subf %97, %96 : vector<1x128xf32>
    %99 = arith.mulf %93, %98 : vector<1x128xf32>
    %c5_49 = arith.constant 5 : index
    %100 = memref.load %arg3[%c5_49] : memref<32xf32, #tpu.memory_space<smem>>
    %101 = vector.broadcast %100 : f32 to vector<1x128xf32>
    %102 = arith.mulf %101, %64 : vector<1x128xf32>
    %cst_50 = arith.constant 1.000000e+00 : f32
    %103 = vector.broadcast %cst_50 : f32 to vector<1x128xf32>
    %104 = arith.subf %103, %102 : vector<1x128xf32>
    %105 = arith.mulf %99, %104 : vector<1x128xf32>
    %c6_51 = arith.constant 6 : index
    %106 = memref.load %arg3[%c6_51] : memref<32xf32, #tpu.memory_space<smem>>
    %107 = vector.broadcast %106 : f32 to vector<1x128xf32>
    %108 = arith.mulf %107, %67 : vector<1x128xf32>
    %cst_52 = arith.constant 1.000000e+00 : f32
    %109 = vector.broadcast %cst_52 : f32 to vector<1x128xf32>
    %110 = arith.subf %109, %108 : vector<1x128xf32>
    %111 = arith.mulf %105, %110 : vector<1x128xf32>
    %c7_53 = arith.constant 7 : index
    %112 = memref.load %arg3[%c7_53] : memref<32xf32, #tpu.memory_space<smem>>
    %113 = vector.broadcast %112 : f32 to vector<1x128xf32>
    %114 = arith.mulf %113, %70 : vector<1x128xf32>
    %cst_54 = arith.constant 1.000000e+00 : f32
    %115 = vector.broadcast %cst_54 : f32 to vector<1x128xf32>
    %116 = arith.subf %115, %114 : vector<1x128xf32>
    %117 = arith.mulf %111, %116 : vector<1x128xf32>
    %cst_55 = arith.constant 1.000000e+00 : f32
    %118 = vector.broadcast %cst_55 : f32 to vector<1x128xf32>
    %119 = arith.subf %118, %117 : vector<1x128xf32>
    %c8_56 = arith.constant 8 : index
    %120 = memref.load %arg3[%c8_56] : memref<32xf32, #tpu.memory_space<smem>>
    %121 = vector.broadcast %120 : f32 to vector<1x128xf32>
    %122 = arith.mulf %121, %49 : vector<1x128xf32>
    %cst_57 = arith.constant 1.000000e+00 : f32
    %123 = vector.broadcast %cst_57 : f32 to vector<1x128xf32>
    %124 = arith.subf %123, %122 : vector<1x128xf32>
    %c9_58 = arith.constant 9 : index
    %125 = memref.load %arg3[%c9_58] : memref<32xf32, #tpu.memory_space<smem>>
    %126 = vector.broadcast %125 : f32 to vector<1x128xf32>
    %127 = arith.mulf %126, %52 : vector<1x128xf32>
    %cst_59 = arith.constant 1.000000e+00 : f32
    %128 = vector.broadcast %cst_59 : f32 to vector<1x128xf32>
    %129 = arith.subf %128, %127 : vector<1x128xf32>
    %130 = arith.mulf %124, %129 : vector<1x128xf32>
    %c10_60 = arith.constant 10 : index
    %131 = memref.load %arg3[%c10_60] : memref<32xf32, #tpu.memory_space<smem>>
    %132 = vector.broadcast %131 : f32 to vector<1x128xf32>
    %133 = arith.mulf %132, %55 : vector<1x128xf32>
    %cst_61 = arith.constant 1.000000e+00 : f32
    %134 = vector.broadcast %cst_61 : f32 to vector<1x128xf32>
    %135 = arith.subf %134, %133 : vector<1x128xf32>
    %136 = arith.mulf %130, %135 : vector<1x128xf32>
    %c11_62 = arith.constant 11 : index
    %137 = memref.load %arg3[%c11_62] : memref<32xf32, #tpu.memory_space<smem>>
    %138 = vector.broadcast %137 : f32 to vector<1x128xf32>
    %139 = arith.mulf %138, %58 : vector<1x128xf32>
    %cst_63 = arith.constant 1.000000e+00 : f32
    %140 = vector.broadcast %cst_63 : f32 to vector<1x128xf32>
    %141 = arith.subf %140, %139 : vector<1x128xf32>
    %142 = arith.mulf %136, %141 : vector<1x128xf32>
    %c12_64 = arith.constant 12 : index
    %143 = memref.load %arg3[%c12_64] : memref<32xf32, #tpu.memory_space<smem>>
    %144 = vector.broadcast %143 : f32 to vector<1x128xf32>
    %145 = arith.mulf %144, %61 : vector<1x128xf32>
    %cst_65 = arith.constant 1.000000e+00 : f32
    %146 = vector.broadcast %cst_65 : f32 to vector<1x128xf32>
    %147 = arith.subf %146, %145 : vector<1x128xf32>
    %148 = arith.mulf %142, %147 : vector<1x128xf32>
    %c13_66 = arith.constant 13 : index
    %149 = memref.load %arg3[%c13_66] : memref<32xf32, #tpu.memory_space<smem>>
    %150 = vector.broadcast %149 : f32 to vector<1x128xf32>
    %151 = arith.mulf %150, %64 : vector<1x128xf32>
    %cst_67 = arith.constant 1.000000e+00 : f32
    %152 = vector.broadcast %cst_67 : f32 to vector<1x128xf32>
    %153 = arith.subf %152, %151 : vector<1x128xf32>
    %154 = arith.mulf %148, %153 : vector<1x128xf32>
    %c14_68 = arith.constant 14 : index
    %155 = memref.load %arg3[%c14_68] : memref<32xf32, #tpu.memory_space<smem>>
    %156 = vector.broadcast %155 : f32 to vector<1x128xf32>
    %157 = arith.mulf %156, %67 : vector<1x128xf32>
    %cst_69 = arith.constant 1.000000e+00 : f32
    %158 = vector.broadcast %cst_69 : f32 to vector<1x128xf32>
    %159 = arith.subf %158, %157 : vector<1x128xf32>
    %160 = arith.mulf %154, %159 : vector<1x128xf32>
    %c15_70 = arith.constant 15 : index
    %161 = memref.load %arg3[%c15_70] : memref<32xf32, #tpu.memory_space<smem>>
    %162 = vector.broadcast %161 : f32 to vector<1x128xf32>
    %163 = arith.mulf %162, %70 : vector<1x128xf32>
    %cst_71 = arith.constant 1.000000e+00 : f32
    %164 = vector.broadcast %cst_71 : f32 to vector<1x128xf32>
    %165 = arith.subf %164, %163 : vector<1x128xf32>
    %166 = arith.mulf %160, %165 : vector<1x128xf32>
    %cst_72 = arith.constant 1.000000e+00 : f32
    %167 = vector.broadcast %cst_72 : f32 to vector<1x128xf32>
    %168 = arith.subf %167, %166 : vector<1x128xf32>
    %c16 = arith.constant 16 : index
    %169 = memref.load %arg3[%c16] : memref<32xf32, #tpu.memory_space<smem>>
    %170 = vector.broadcast %169 : f32 to vector<1x128xf32>
    %171 = arith.mulf %170, %49 : vector<1x128xf32>
    %cst_73 = arith.constant 1.000000e+00 : f32
    %172 = vector.broadcast %cst_73 : f32 to vector<1x128xf32>
    %173 = arith.subf %172, %171 : vector<1x128xf32>
    %c17 = arith.constant 17 : index
    %174 = memref.load %arg3[%c17] : memref<32xf32, #tpu.memory_space<smem>>
    %175 = vector.broadcast %174 : f32 to vector<1x128xf32>
    %176 = arith.mulf %175, %52 : vector<1x128xf32>
    %cst_74 = arith.constant 1.000000e+00 : f32
    %177 = vector.broadcast %cst_74 : f32 to vector<1x128xf32>
    %178 = arith.subf %177, %176 : vector<1x128xf32>
    %179 = arith.mulf %173, %178 : vector<1x128xf32>
    %c18 = arith.constant 18 : index
    %180 = memref.load %arg3[%c18] : memref<32xf32, #tpu.memory_space<smem>>
    %181 = vector.broadcast %180 : f32 to vector<1x128xf32>
    %182 = arith.mulf %181, %55 : vector<1x128xf32>
    %cst_75 = arith.constant 1.000000e+00 : f32
    %183 = vector.broadcast %cst_75 : f32 to vector<1x128xf32>
    %184 = arith.subf %183, %182 : vector<1x128xf32>
    %185 = arith.mulf %179, %184 : vector<1x128xf32>
    %c19 = arith.constant 19 : index
    %186 = memref.load %arg3[%c19] : memref<32xf32, #tpu.memory_space<smem>>
    %187 = vector.broadcast %186 : f32 to vector<1x128xf32>
    %188 = arith.mulf %187, %58 : vector<1x128xf32>
    %cst_76 = arith.constant 1.000000e+00 : f32
    %189 = vector.broadcast %cst_76 : f32 to vector<1x128xf32>
    %190 = arith.subf %189, %188 : vector<1x128xf32>
    %191 = arith.mulf %185, %190 : vector<1x128xf32>
    %c20 = arith.constant 20 : index
    %192 = memref.load %arg3[%c20] : memref<32xf32, #tpu.memory_space<smem>>
    %193 = vector.broadcast %192 : f32 to vector<1x128xf32>
    %194 = arith.mulf %193, %61 : vector<1x128xf32>
    %cst_77 = arith.constant 1.000000e+00 : f32
    %195 = vector.broadcast %cst_77 : f32 to vector<1x128xf32>
    %196 = arith.subf %195, %194 : vector<1x128xf32>
    %197 = arith.mulf %191, %196 : vector<1x128xf32>
    %c21 = arith.constant 21 : index
    %198 = memref.load %arg3[%c21] : memref<32xf32, #tpu.memory_space<smem>>
    %199 = vector.broadcast %198 : f32 to vector<1x128xf32>
    %200 = arith.mulf %199, %64 : vector<1x128xf32>
    %cst_78 = arith.constant 1.000000e+00 : f32
    %201 = vector.broadcast %cst_78 : f32 to vector<1x128xf32>
    %202 = arith.subf %201, %200 : vector<1x128xf32>
    %203 = arith.mulf %197, %202 : vector<1x128xf32>
    %c22 = arith.constant 22 : index
    %204 = memref.load %arg3[%c22] : memref<32xf32, #tpu.memory_space<smem>>
    %205 = vector.broadcast %204 : f32 to vector<1x128xf32>
    %206 = arith.mulf %205, %67 : vector<1x128xf32>
    %cst_79 = arith.constant 1.000000e+00 : f32
    %207 = vector.broadcast %cst_79 : f32 to vector<1x128xf32>
    %208 = arith.subf %207, %206 : vector<1x128xf32>
    %209 = arith.mulf %203, %208 : vector<1x128xf32>
    %c23 = arith.constant 23 : index
    %210 = memref.load %arg3[%c23] : memref<32xf32, #tpu.memory_space<smem>>
    %211 = vector.broadcast %210 : f32 to vector<1x128xf32>
    %212 = arith.mulf %211, %70 : vector<1x128xf32>
    %cst_80 = arith.constant 1.000000e+00 : f32
    %213 = vector.broadcast %cst_80 : f32 to vector<1x128xf32>
    %214 = arith.subf %213, %212 : vector<1x128xf32>
    %215 = arith.mulf %209, %214 : vector<1x128xf32>
    %cst_81 = arith.constant 1.000000e+00 : f32
    %216 = vector.broadcast %cst_81 : f32 to vector<1x128xf32>
    %217 = arith.subf %216, %215 : vector<1x128xf32>
    %c24 = arith.constant 24 : index
    %218 = memref.load %arg3[%c24] : memref<32xf32, #tpu.memory_space<smem>>
    %219 = vector.broadcast %218 : f32 to vector<1x128xf32>
    %220 = arith.mulf %219, %49 : vector<1x128xf32>
    %cst_82 = arith.constant 1.000000e+00 : f32
    %221 = vector.broadcast %cst_82 : f32 to vector<1x128xf32>
    %222 = arith.subf %221, %220 : vector<1x128xf32>
    %c25 = arith.constant 25 : index
    %223 = memref.load %arg3[%c25] : memref<32xf32, #tpu.memory_space<smem>>
    %224 = vector.broadcast %223 : f32 to vector<1x128xf32>
    %225 = arith.mulf %224, %52 : vector<1x128xf32>
    %cst_83 = arith.constant 1.000000e+00 : f32
    %226 = vector.broadcast %cst_83 : f32 to vector<1x128xf32>
    %227 = arith.subf %226, %225 : vector<1x128xf32>
    %228 = arith.mulf %222, %227 : vector<1x128xf32>
    %c26 = arith.constant 26 : index
    %229 = memref.load %arg3[%c26] : memref<32xf32, #tpu.memory_space<smem>>
    %230 = vector.broadcast %229 : f32 to vector<1x128xf32>
    %231 = arith.mulf %230, %55 : vector<1x128xf32>
    %cst_84 = arith.constant 1.000000e+00 : f32
    %232 = vector.broadcast %cst_84 : f32 to vector<1x128xf32>
    %233 = arith.subf %232, %231 : vector<1x128xf32>
    %234 = arith.mulf %228, %233 : vector<1x128xf32>
    %c27 = arith.constant 27 : index
    %235 = memref.load %arg3[%c27] : memref<32xf32, #tpu.memory_space<smem>>
    %236 = vector.broadcast %235 : f32 to vector<1x128xf32>
    %237 = arith.mulf %236, %58 : vector<1x128xf32>
    %cst_85 = arith.constant 1.000000e+00 : f32
    %238 = vector.broadcast %cst_85 : f32 to vector<1x128xf32>
    %239 = arith.subf %238, %237 : vector<1x128xf32>
    %240 = arith.mulf %234, %239 : vector<1x128xf32>
    %c28 = arith.constant 28 : index
    %241 = memref.load %arg3[%c28] : memref<32xf32, #tpu.memory_space<smem>>
    %242 = vector.broadcast %241 : f32 to vector<1x128xf32>
    %243 = arith.mulf %242, %61 : vector<1x128xf32>
    %cst_86 = arith.constant 1.000000e+00 : f32
    %244 = vector.broadcast %cst_86 : f32 to vector<1x128xf32>
    %245 = arith.subf %244, %243 : vector<1x128xf32>
    %246 = arith.mulf %240, %245 : vector<1x128xf32>
    %c29 = arith.constant 29 : index
    %247 = memref.load %arg3[%c29] : memref<32xf32, #tpu.memory_space<smem>>
    %248 = vector.broadcast %247 : f32 to vector<1x128xf32>
    %249 = arith.mulf %248, %64 : vector<1x128xf32>
    %cst_87 = arith.constant 1.000000e+00 : f32
    %250 = vector.broadcast %cst_87 : f32 to vector<1x128xf32>
    %251 = arith.subf %250, %249 : vector<1x128xf32>
    %252 = arith.mulf %246, %251 : vector<1x128xf32>
    %c30 = arith.constant 30 : index
    %253 = memref.load %arg3[%c30] : memref<32xf32, #tpu.memory_space<smem>>
    %254 = vector.broadcast %253 : f32 to vector<1x128xf32>
    %255 = arith.mulf %254, %67 : vector<1x128xf32>
    %cst_88 = arith.constant 1.000000e+00 : f32
    %256 = vector.broadcast %cst_88 : f32 to vector<1x128xf32>
    %257 = arith.subf %256, %255 : vector<1x128xf32>
    %258 = arith.mulf %252, %257 : vector<1x128xf32>
    %c31 = arith.constant 31 : index
    %259 = memref.load %arg3[%c31] : memref<32xf32, #tpu.memory_space<smem>>
    %260 = vector.broadcast %259 : f32 to vector<1x128xf32>
    %261 = arith.mulf %260, %70 : vector<1x128xf32>
    %cst_89 = arith.constant 1.000000e+00 : f32
    %262 = vector.broadcast %cst_89 : f32 to vector<1x128xf32>
    %263 = arith.subf %262, %261 : vector<1x128xf32>
    %264 = arith.mulf %258, %263 : vector<1x128xf32>
    %cst_90 = arith.constant 1.000000e+00 : f32
    %265 = vector.broadcast %cst_90 : f32 to vector<1x128xf32>
    %266 = arith.subf %265, %264 : vector<1x128xf32>
    %267 = arith.mulf %119, %168 : vector<1x128xf32>
    %268 = arith.mulf %267, %217 : vector<1x128xf32>
    %269 = arith.mulf %268, %266 : vector<1x128xf32>
    %c0_91 = arith.constant 0 : index
    %270 = memref.load %arg4[%c0_91] : memref<16xf32, #tpu.memory_space<smem>>
    %271 = vector.broadcast %270 : f32 to vector<1x128xf32>
    %272 = arith.mulf %271, %269 : vector<1x128xf32>
    %c1_92 = arith.constant 1 : index
    %273 = memref.load %arg4[%c1_92] : memref<16xf32, #tpu.memory_space<smem>>
    %274 = vector.broadcast %273 : f32 to vector<1x128xf32>
    %275 = arith.mulf %274, %269 : vector<1x128xf32>
    %c2_93 = arith.constant 2 : index
    %276 = memref.load %arg4[%c2_93] : memref<16xf32, #tpu.memory_space<smem>>
    %277 = vector.broadcast %276 : f32 to vector<1x128xf32>
    %278 = arith.mulf %277, %269 : vector<1x128xf32>
    %c3_94 = arith.constant 3 : index
    %279 = memref.load %arg4[%c3_94] : memref<16xf32, #tpu.memory_space<smem>>
    %280 = vector.broadcast %279 : f32 to vector<1x128xf32>
    %281 = arith.mulf %280, %269 : vector<1x128xf32>
    %c4_95 = arith.constant 4 : index
    %282 = memref.load %arg4[%c4_95] : memref<16xf32, #tpu.memory_space<smem>>
    %283 = vector.broadcast %282 : f32 to vector<1x128xf32>
    %284 = arith.mulf %283, %269 : vector<1x128xf32>
    %c5_96 = arith.constant 5 : index
    %285 = memref.load %arg4[%c5_96] : memref<16xf32, #tpu.memory_space<smem>>
    %286 = vector.broadcast %285 : f32 to vector<1x128xf32>
    %287 = arith.mulf %286, %269 : vector<1x128xf32>
    %c6_97 = arith.constant 6 : index
    %288 = memref.load %arg4[%c6_97] : memref<16xf32, #tpu.memory_space<smem>>
    %289 = vector.broadcast %288 : f32 to vector<1x128xf32>
    %290 = arith.mulf %289, %269 : vector<1x128xf32>
    %c7_98 = arith.constant 7 : index
    %291 = memref.load %arg4[%c7_98] : memref<16xf32, #tpu.memory_space<smem>>
    %292 = vector.broadcast %291 : f32 to vector<1x128xf32>
    %293 = arith.mulf %292, %269 : vector<1x128xf32>
    %c8_99 = arith.constant 8 : index
    %294 = memref.load %arg4[%c8_99] : memref<16xf32, #tpu.memory_space<smem>>
    %295 = vector.broadcast %294 : f32 to vector<1x128xf32>
    %296 = arith.mulf %295, %269 : vector<1x128xf32>
    %c9_100 = arith.constant 9 : index
    %297 = memref.load %arg4[%c9_100] : memref<16xf32, #tpu.memory_space<smem>>
    %298 = vector.broadcast %297 : f32 to vector<1x128xf32>
    %299 = arith.mulf %298, %269 : vector<1x128xf32>
    %c10_101 = arith.constant 10 : index
    %300 = memref.load %arg4[%c10_101] : memref<16xf32, #tpu.memory_space<smem>>
    %301 = vector.broadcast %300 : f32 to vector<1x128xf32>
    %302 = arith.mulf %301, %269 : vector<1x128xf32>
    %c11_102 = arith.constant 11 : index
    %303 = memref.load %arg4[%c11_102] : memref<16xf32, #tpu.memory_space<smem>>
    %304 = vector.broadcast %303 : f32 to vector<1x128xf32>
    %305 = arith.mulf %304, %269 : vector<1x128xf32>
    %c12_103 = arith.constant 12 : index
    %306 = memref.load %arg4[%c12_103] : memref<16xf32, #tpu.memory_space<smem>>
    %307 = vector.broadcast %306 : f32 to vector<1x128xf32>
    %308 = arith.mulf %307, %269 : vector<1x128xf32>
    %c13_104 = arith.constant 13 : index
    %309 = memref.load %arg4[%c13_104] : memref<16xf32, #tpu.memory_space<smem>>
    %310 = vector.broadcast %309 : f32 to vector<1x128xf32>
    %311 = arith.mulf %310, %269 : vector<1x128xf32>
    %c14_105 = arith.constant 14 : index
    %312 = memref.load %arg4[%c14_105] : memref<16xf32, #tpu.memory_space<smem>>
    %313 = vector.broadcast %312 : f32 to vector<1x128xf32>
    %314 = arith.mulf %313, %269 : vector<1x128xf32>
    %c15_106 = arith.constant 15 : index
    %315 = memref.load %arg4[%c15_106] : memref<16xf32, #tpu.memory_space<smem>>
    %316 = vector.broadcast %315 : f32 to vector<1x128xf32>
    %317 = arith.mulf %316, %269 : vector<1x128xf32>
    %c0_107 = arith.constant 0 : index
    %c0_108 = arith.constant 0 : index
    %c0_109 = arith.constant 0 : index
    %318 = vector.load %arg5[%c0_107, %c0_108, %c0_109] : memref<16x1x128xf32, #tpu.memory_space<vmem>>, vector<1x1x128xf32>
    %319 = vector.shape_cast %318 : vector<1x1x128xf32> to vector<1x128xf32>
    %320 = vector.shape_cast %272 : vector<1x128xf32> to vector<1x1x128xf32>
    tpu.vector_store %arg5[%c0_107, %c0_108, %c0_109], %320 {strides = array<i32>} : memref<16x1x128xf32, #tpu.memory_space<vmem>>, vector<1x1x128xf32>,
    %c1_110 = arith.constant 1 : index
    %c0_111 = arith.constant 0 : index
    %c0_112 = arith.constant 0 : index
    %321 = vector.load %arg5[%c1_110, %c0_111, %c0_112] : memref<16x1x128xf32, #tpu.memory_space<vmem>>, vector<1x1x128xf32>
    %322 = vector.shape_cast %321 : vector<1x1x128xf32> to vector<1x128xf32>
    %323 = vector.shape_cast %275 : vector<1x128xf32> to vector<1x1x128xf32>
    tpu.vector_store %arg5[%c1_110, %c0_111, %c0_112], %323 {strides = array<i32>} : memref<16x1x128xf32, #tpu.memory_space<vmem>>, vector<1x1x128xf32>,
    %c2_113 = arith.constant 2 : index
    %c0_114 = arith.constant 0 : index
    %c0_115 = arith.constant 0 : index
    %324 = vector.load %arg5[%c2_113, %c0_114, %c0_115] : memref<16x1x128xf32, #tpu.memory_space<vmem>>, vector<1x1x128xf32>
    %325 = vector.shape_cast %324 : vector<1x1x128xf32> to vector<1x128xf32>
    %326 = vector.shape_cast %278 : vector<1x128xf32> to vector<1x1x128xf32>
    tpu.vector_store %arg5[%c2_113, %c0_114, %c0_115], %326 {strides = array<i32>} : memref<16x1x128xf32, #tpu.memory_space<vmem>>, vector<1x1x128xf32>,
    %c3_116 = arith.constant 3 : index
    %c0_117 = arith.constant 0 : index
    %c0_118 = arith.constant 0 : index
    %327 = vector.load %arg5[%c3_116, %c0_117, %c0_118] : memref<16x1x128xf32, #tpu.memory_space<vmem>>, vector<1x1x128xf32>
    %328 = vector.shape_cast %327 : vector<1x1x128xf32> to vector<1x128xf32>
    %329 = vector.shape_cast %281 : vector<1x128xf32> to vector<1x1x128xf32>
    tpu.vector_store %arg5[%c3_116, %c0_117, %c0_118], %329 {strides = array<i32>} : memref<16x1x128xf32, #tpu.memory_space<vmem>>, vector<1x1x128xf32>,
    %c4_119 = arith.constant 4 : index
    %c0_120 = arith.constant 0 : index
    %c0_121 = arith.constant 0 : index
    %330 = vector.load %arg5[%c4_119, %c0_120, %c0_121] : memref<16x1x128xf32, #tpu.memory_space<vmem>>, vector<1x1x128xf32>
    %331 = vector.shape_cast %330 : vector<1x1x128xf32> to vector<1x128xf32>
    %332 = vector.shape_cast %284 : vector<1x128xf32> to vector<1x1x128xf32>
    tpu.vector_store %arg5[%c4_119, %c0_120, %c0_121], %332 {strides = array<i32>} : memref<16x1x128xf32, #tpu.memory_space<vmem>>, vector<1x1x128xf32>,
    %c5_122 = arith.constant 5 : index
    %c0_123 = arith.constant 0 : index
    %c0_124 = arith.constant 0 : index
    %333 = vector.load %arg5[%c5_122, %c0_123, %c0_124] : memref<16x1x128xf32, #tpu.memory_space<vmem>>, vector<1x1x128xf32>
    %334 = vector.shape_cast %333 : vector<1x1x128xf32> to vector<1x128xf32>
    %335 = vector.shape_cast %287 : vector<1x128xf32> to vector<1x1x128xf32>
    tpu.vector_store %arg5[%c5_122, %c0_123, %c0_124], %335 {strides = array<i32>} : memref<16x1x128xf32, #tpu.memory_space<vmem>>, vector<1x1x128xf32>,
    %c6_125 = arith.constant 6 : index
    %c0_126 = arith.constant 0 : index
    %c0_127 = arith.constant 0 : index
    %336 = vector.load %arg5[%c6_125, %c0_126, %c0_127] : memref<16x1x128xf32, #tpu.memory_space<vmem>>, vector<1x1x128xf32>
    %337 = vector.shape_cast %336 : vector<1x1x128xf32> to vector<1x128xf32>
    %338 = vector.shape_cast %290 : vector<1x128xf32> to vector<1x1x128xf32>
    tpu.vector_store %arg5[%c6_125, %c0_126, %c0_127], %338 {strides = array<i32>} : memref<16x1x128xf32, #tpu.memory_space<vmem>>, vector<1x1x128xf32>,
    %c7_128 = arith.constant 7 : index
    %c0_129 = arith.constant 0 : index
    %c0_130 = arith.constant 0 : index
    %339 = vector.load %arg5[%c7_128, %c0_129, %c0_130] : memref<16x1x128xf32, #tpu.memory_space<vmem>>, vector<1x1x128xf32>
    %340 = vector.shape_cast %339 : vector<1x1x128xf32> to vector<1x128xf32>
    %341 = vector.shape_cast %293 : vector<1x128xf32> to vector<1x1x128xf32>
    tpu.vector_store %arg5[%c7_128, %c0_129, %c0_130], %341 {strides = array<i32>} : memref<16x1x128xf32, #tpu.memory_space<vmem>>, vector<1x1x128xf32>,
    %c8_131 = arith.constant 8 : index
    %c0_132 = arith.constant 0 : index
    %c0_133 = arith.constant 0 : index
    %342 = vector.load %arg5[%c8_131, %c0_132, %c0_133] : memref<16x1x128xf32, #tpu.memory_space<vmem>>, vector<1x1x128xf32>
    %343 = vector.shape_cast %342 : vector<1x1x128xf32> to vector<1x128xf32>
    %344 = vector.shape_cast %296 : vector<1x128xf32> to vector<1x1x128xf32>
    tpu.vector_store %arg5[%c8_131, %c0_132, %c0_133], %344 {strides = array<i32>} : memref<16x1x128xf32, #tpu.memory_space<vmem>>, vector<1x1x128xf32>,
    %c9_134 = arith.constant 9 : index
    %c0_135 = arith.constant 0 : index
    %c0_136 = arith.constant 0 : index
    %345 = vector.load %arg5[%c9_134, %c0_135, %c0_136] : memref<16x1x128xf32, #tpu.memory_space<vmem>>, vector<1x1x128xf32>
    %346 = vector.shape_cast %345 : vector<1x1x128xf32> to vector<1x128xf32>
    %347 = vector.shape_cast %299 : vector<1x128xf32> to vector<1x1x128xf32>
    tpu.vector_store %arg5[%c9_134, %c0_135, %c0_136], %347 {strides = array<i32>} : memref<16x1x128xf32, #tpu.memory_space<vmem>>, vector<1x1x128xf32>,
    %c10_137 = arith.constant 10 : index
    %c0_138 = arith.constant 0 : index
    %c0_139 = arith.constant 0 : index
    %348 = vector.load %arg5[%c10_137, %c0_138, %c0_139] : memref<16x1x128xf32, #tpu.memory_space<vmem>>, vector<1x1x128xf32>
    %349 = vector.shape_cast %348 : vector<1x1x128xf32> to vector<1x128xf32>
    %350 = vector.shape_cast %302 : vector<1x128xf32> to vector<1x1x128xf32>
    tpu.vector_store %arg5[%c10_137, %c0_138, %c0_139], %350 {strides = array<i32>} : memref<16x1x128xf32, #tpu.memory_space<vmem>>, vector<1x1x128xf32>,
    %c11_140 = arith.constant 11 : index
    %c0_141 = arith.constant 0 : index
    %c0_142 = arith.constant 0 : index
    %351 = vector.load %arg5[%c11_140, %c0_141, %c0_142] : memref<16x1x128xf32, #tpu.memory_space<vmem>>, vector<1x1x128xf32>
    %352 = vector.shape_cast %351 : vector<1x1x128xf32> to vector<1x128xf32>
    %353 = vector.shape_cast %305 : vector<1x128xf32> to vector<1x1x128xf32>
    tpu.vector_store %arg5[%c11_140, %c0_141, %c0_142], %353 {strides = array<i32>} : memref<16x1x128xf32, #tpu.memory_space<vmem>>, vector<1x1x128xf32>,
    %c12_143 = arith.constant 12 : index
    %c0_144 = arith.constant 0 : index
    %c0_145 = arith.constant 0 : index
    %354 = vector.load %arg5[%c12_143, %c0_144, %c0_145] : memref<16x1x128xf32, #tpu.memory_space<vmem>>, vector<1x1x128xf32>
    %355 = vector.shape_cast %354 : vector<1x1x128xf32> to vector<1x128xf32>
    %356 = vector.shape_cast %308 : vector<1x128xf32> to vector<1x1x128xf32>
    tpu.vector_store %arg5[%c12_143, %c0_144, %c0_145], %356 {strides = array<i32>} : memref<16x1x128xf32, #tpu.memory_space<vmem>>, vector<1x1x128xf32>,
    %c13_146 = arith.constant 13 : index
    %c0_147 = arith.constant 0 : index
    %c0_148 = arith.constant 0 : index
    %357 = vector.load %arg5[%c13_146, %c0_147, %c0_148] : memref<16x1x128xf32, #tpu.memory_space<vmem>>, vector<1x1x128xf32>
    %358 = vector.shape_cast %357 : vector<1x1x128xf32> to vector<1x128xf32>
    %359 = vector.shape_cast %311 : vector<1x128xf32> to vector<1x1x128xf32>
    tpu.vector_store %arg5[%c13_146, %c0_147, %c0_148], %359 {strides = array<i32>} : memref<16x1x128xf32, #tpu.memory_space<vmem>>, vector<1x1x128xf32>,
    %c14_149 = arith.constant 14 : index
    %c0_150 = arith.constant 0 : index
    %c0_151 = arith.constant 0 : index
    %360 = vector.load %arg5[%c14_149, %c0_150, %c0_151] : memref<16x1x128xf32, #tpu.memory_space<vmem>>, vector<1x1x128xf32>
    %361 = vector.shape_cast %360 : vector<1x1x128xf32> to vector<1x128xf32>
    %362 = vector.shape_cast %314 : vector<1x128xf32> to vector<1x1x128xf32>
    tpu.vector_store %arg5[%c14_149, %c0_150, %c0_151], %362 {strides = array<i32>} : memref<16x1x128xf32, #tpu.memory_space<vmem>>, vector<1x1x128xf32>,
    %c15_152 = arith.constant 15 : index
    %c0_153 = arith.constant 0 : index
    %c0_154 = arith.constant 0 : index
    %363 = vector.load %arg5[%c15_152, %c0_153, %c0_154] : memref<16x1x128xf32, #tpu.memory_space<vmem>>, vector<1x1x128xf32>
    %364 = vector.shape_cast %363 : vector<1x1x128xf32> to vector<1x128xf32>
    %365 = vector.shape_cast %317 : vector<1x128xf32> to vector<1x1x128xf32>
    tpu.vector_store %arg5[%c15_152, %c0_153, %c0_154], %365 {strides = array<i32>} : memref<16x1x128xf32, #tpu.memory_space<vmem>>, vector<1x1x128xf32>,
    return
  }
  func.func @transform_0(%arg0: i32) -> (i32, i32, i32) {
    %c0_i32 = arith.constant 0 : i32
    %c0_i32_0 = arith.constant 0 : i32
    %c0_i32_1 = arith.constant 0 : i32
    return %c0_i32, %arg0, %c0_i32_0 : i32, i32, i32
  }
  func.func @transform_1(%arg0: i32) -> i32 {
    %c0_i32 = arith.constant 0 : i32
    %c0_i32_0 = arith.constant 0 : i32
    return %c0_i32 : i32
  }
  func.func @transform_2(%arg0: i32) -> i32 {
    %c0_i32 = arith.constant 0 : i32
    %c0_i32_0 = arith.constant 0 : i32
    return %c0_i32 : i32
  }
  func.func @transform_3(%arg0: i32) -> i32 {
    %c0_i32 = arith.constant 0 : i32
    %c0_i32_0 = arith.constant 0 : i32
    return %c0_i32 : i32
  }
  func.func @transform_4(%arg0: i32) -> (i32, i32, i32) {
    %c0_i32 = arith.constant 0 : i32
    %c0_i32_0 = arith.constant 0 : i32
    %c0_i32_1 = arith.constant 0 : i32
    return %c0_i32, %arg0, %c0_i32_0 : i32, i32, i32
  }
}

</mosaic_0001>

<llo_original>
// kernel: forward.1
$region0: #{forward.1}
  #allocation0 [shape = 'u32[]', space=smem, size = 0x4, offset = 0x4, fixed_abs, tag = 'smem constant byte address 0x4 - core index']
  #allocation1 [shape = 'u32[72,128]{1,0:T(1,128)}', space=vmem, size = 0x9000, scoped, tag = 'internal scratch']
  %s0 = inlined_call_operand.vmem [shape: f32[16,1,128], index: 0, kind: input, shape index: {}]
  %s1 = inlined_call_operand.vmem [shape: f32[8], index: 1, kind: input, shape index: {}]
  %s2 = inlined_call_operand.vmem [shape: f32[32], index: 2, kind: input, shape index: {}]
  %s3 = inlined_call_operand.vmem [shape: f32[16], index: 3, kind: input, shape index: {}]
  %s4 = inlined_call_operand.vmem [shape: f32[16,1,128], index: 4, kind: output, shape index: {}]
  %s5 = sld [smem:[#allocation0]]
  $region38: #{forward.1} parent=0
    _
  %s7 = ssub.s32 1, %s5
  %s8 = scalar_select 0, %s7, %s5
  $region1: #{forward.1} parent=0
    #allocation2 [shape = 'u8[512]{0}', space=smem, size = 0x200, scoped, tag = 'input window, operand 1, single buffered']
    #allocation3 [shape = 's32[1]{0}', space=sflag, size = 0x4, scoped, tag = 'scoped memory for forward.1']
    #allocation4 [shape = 'u8[512]{0}', space=smem, size = 0x200, scoped, tag = 'input window, operand 2, single buffered']
    #allocation5 [shape = 's32[1]{0}', space=sflag, size = 0x4, scoped, tag = 'scoped memory for forward.1']
    #allocation6 [shape = 'u8[512]{0}', space=smem, size = 0x200, scoped, tag = 'input window, operand 3, single buffered']
    %9 = vsyncpa [#allocation3], 0
    %10 = vsyncpa [#allocation5], 0
    // Predicated region
    $region2: #{forward.1} parent=1 // pred_check
      _
    $region3: #{forward.1} parent=1 // pred_check_branch
      %12 = sbr.rel (0) target = $region5
    $region4: #{forward.1} parent=1 // pred_region
      _
    $region5: #{forward.1} parent=1 // pred_fallthru
      _
    // Predicated region
    $region6: #{forward.1} parent=1 // pred_check
      _
    $region7: #{forward.1} parent=1 // pred_check_branch
      %14 = sbr.rel (0) target = $region9
    $region8: #{forward.1} parent=1 // pred_region
      %16 = vsyncadd [#allocation3], 0
      %s18 = sshll.u32 %s1, 4
      %s19 = int_to_ptr.vmem [resolvable:$true] %s18
      %21 = dma.vmem_to_smem %s19, 16, [#allocation2], [#allocation3]
    $region9: #{forward.1} parent=1 // pred_fallthru
      _
    // Predicated region
    $region10: #{forward.1} parent=1 // pred_check
      _
    $region11: #{forward.1} parent=1 // pred_check_branch
      %23 = sbr.rel (0) target = $region13
    $region12: #{forward.1} parent=1 // pred_region
      %25 = vsyncadd [#allocation5], 0
      %s27 = sshll.u32 %s2, 4
      %s28 = int_to_ptr.vmem [resolvable:$true] %s27
      %30 = dma.vmem_to_smem %s28, 16, [#allocation4], [#allocation5]
    $region13: #{forward.1} parent=1 // pred_fallthru
      _
    // Predicated region
    $region14: #{forward.1} parent=1 // pred_check
      _
    $region15: #{forward.1} parent=1 // pred_check_branch
      %32 = sbr.rel (0) target = $region17
    $region16: #{forward.1} parent=1 // pred_region
      %34 = vsyncadd [#allocation5], 0
      %s36 = sshll.u32 %s3, 4
      %s37 = int_to_ptr.vmem [resolvable:$true] %s36
      %39 = dma.vmem_to_smem %s37, 16, [#allocation6], [#allocation5]
    $region17: #{forward.1} parent=1 // pred_fallthru
      _
    // Predicated region
    $region18: #{forward.1} parent=1 // pred_check
      _
    $region19: #{forward.1} parent=1 // pred_check_branch
      %41 = sbr.rel (0) target = $region21
    $region20: #{forward.1} parent=1 // pred_region
      %43 = dma.done [#allocation3], 16
    $region21: #{forward.1} parent=1 // pred_fallthru
      _
    // Predicated region
    $region22: #{forward.1} parent=1 // pred_check
      _
    $region23: #{forward.1} parent=1 // pred_check_branch
      %45 = sbr.rel (0) target = $region25
    $region24: #{forward.1} parent=1 // pred_region
      %47 = dma.done [#allocation5], 16
    $region25: #{forward.1} parent=1 // pred_fallthru
      _
    // Predicated region
    $region26: #{forward.1} parent=1 // pred_check
      _
    $region27: #{forward.1} parent=1 // pred_check_branch
      %49 = sbr.rel (0) target = $region29
    $region28: #{forward.1} parent=1 // pred_region
      %51 = dma.done [#allocation5], 16
    $region29: #{forward.1} parent=1 // pred_fallthru
      _
    %52 = sfence
    %v53 = vld [vmem:[%s0] sm:$0x1]
    %s54 = scalar_lea.vmem %s0, 1
    %v55 = vld [vmem:[%s54] sm:$0x1]
    %s56 = scalar_lea.vmem %s0, 2
    %v57 = vld [vmem:[%s56] sm:$0x1]
    %s58 = scalar_lea.vmem %s0, 3
    %v59 = vld [vmem:[%s58] sm:$0x1]
    %s60 = scalar_lea.vmem %s0, 4
    %v61 = vld [vmem:[%s60] sm:$0x1]
    %s62 = scalar_lea.vmem %s0, 5
    %v63 = vld [vmem:[%s62] sm:$0x1]
    %s64 = scalar_lea.vmem %s0, 6
    %v65 = vld [vmem:[%s64] sm:$0x1]
    %s66 = scalar_lea.vmem %s0, 7
    %v67 = vld [vmem:[%s66] sm:$0x1]
    %s68 = scalar_lea.vmem %s0, 8
    %v69 = vld [vmem:[%s68] sm:$0x1]
    %s70 = scalar_lea.vmem %s0, 9
    %v71 = vld [vmem:[%s70] sm:$0x1]
    %s72 = scalar_lea.vmem %s0, 10
    %v73 = vld [vmem:[%s72] sm:$0x1]
    %s74 = scalar_lea.vmem %s0, 11
    %v75 = vld [vmem:[%s74] sm:$0x1]
    %s76 = scalar_lea.vmem %s0, 12
    %v77 = vld [vmem:[%s76] sm:$0x1]
    %s78 = scalar_lea.vmem %s0, 13
    %v79 = vld [vmem:[%s78] sm:$0x1]
    %s80 = scalar_lea.vmem %s0, 14
    %v81 = vld [vmem:[%s80] sm:$0x1]
    %s82 = scalar_lea.vmem %s0, 15
    %v83 = vld [vmem:[%s82] sm:$0x1]
    %v84 = vmul.f32 %v53, %v55
    %v85 = vmul.f32 %v84, %v57
    %v86 = vmul.f32 %v85, %v59
    %v87 = vmul.f32 %v86, %v61
    %v88 = vmul.f32 %v87, %v63
    %v89 = vmul.f32 %v88, %v65
    %v90 = vmul.f32 %v89, %v67
    %v91 = vmul.f32 %v90, %v69
    %v92 = vmul.f32 %v91, %v71
    %v93 = vmul.f32 %v92, %v73
    %v94 = vmul.f32 %v93, %v75
    %v95 = vmul.f32 %v94, %v77
    %v96 = vmul.f32 %v95, %v79
    %v97 = vmul.f32 %v96, %v81
    %v98 = vmul.f32 %v97, %v83
    %s99 = sld [smem:[#allocation2]]
    %v100 = vstv %s99
    %v101 = vmul.f32 %v100, %v98
    %s102 = sld [smem:[#allocation2 + $0x1]]
    %v103 = vstv %s102
    %v104 = vmul.f32 %v103, %v98
    %s105 = sld [smem:[#allocation2 + $0x2]]
    %v106 = vstv %s105
    %v107 = vmul.f32 %v106, %v98
    %s108 = sld [smem:[#allocation2 + $0x3]]
    %v109 = vstv %s108
    %v110 = vmul.f32 %v109, %v98
    %s111 = sld [smem:[#allocation2 + $0x4]]
    %v112 = vstv %s111
    %v113 = vmul.f32 %v112, %v98
    %s114 = sld [smem:[#allocation2 + $0x5]]
    %v115 = vstv %s114
    %v116 = vmul.f32 %v115, %v98
    %s117 = sld [smem:[#allocation2 + $0x6]]
    %v118 = vstv %s117
    %v119 = vmul.f32 %v118, %v98
    %s120 = sld [smem:[#allocation2 + $0x7]]
    %v121 = vstv %s120
    %v122 = vmul.f32 %v121, %v98
    %s123 = sld [smem:[#allocation4]]
    %v124 = vstv %s123
    %v125 = vmul.f32 %v124, %v101
    %v126 = vsub.f32 1.0, %v125
    %s127 = sld [smem:[#allocation4 + $0x1]]
    %v128 = vstv %s127
    %v129 = vmul.f32 %v128, %v104
    %v130 = vsub.f32 1.0, %v129
    %v131 = vmul.f32 %v126, %v130
    %s132 = sld [smem:[#allocation4 + $0x2]]
    %v133 = vstv %s132
    %v134 = vmul.f32 %v133, %v107
    %v135 = vsub.f32 1.0, %v134
    %v136 = vmul.f32 %v131, %v135
    %s137 = sld [smem:[#allocation4 + $0x3]]
    %v138 = vstv %s137
    %v139 = vmul.f32 %v138, %v110
    %v140 = vsub.f32 1.0, %v139
    %v141 = vmul.f32 %v136, %v140
    %s142 = sld [smem:[#allocation4 + $0x4]]
    %v143 = vstv %s142
    %v144 = vmul.f32 %v143, %v113
    %v145 = vsub.f32 1.0, %v144
    %v146 = vmul.f32 %v141, %v145
    %s147 = sld [smem:[#allocation4 + $0x5]]
    %v148 = vstv %s147
    %v149 = vmul.f32 %v148, %v116
    %v150 = vsub.f32 1.0, %v149
    %v151 = vmul.f32 %v146, %v150
    %s152 = sld [smem:[#allocation4 + $0x6]]
    %v153 = vstv %s152
    %v154 = vmul.f32 %v153, %v119
    %v155 = vsub.f32 1.0, %v154
    %v156 = vmul.f32 %v151, %v155
    %s157 = sld [smem:[#allocation4 + $0x7]]
    %v158 = vstv %s157
    %v159 = vmul.f32 %v158, %v122
    %v160 = vsub.f32 1.0, %v159
    %v161 = vmul.f32 %v156, %v160
    %v162 = vsub.f32 1.0, %v161
    %s163 = sld [smem:[#allocation4 + $0x8]]
    %v164 = vstv %s163
    %v165 = vmul.f32 %v164, %v101
    %v166 = vsub.f32 1.0, %v165
    %s167 = sld [smem:[#allocation4 + $0x9]]
    %v168 = vstv %s167
    %v169 = vmul.f32 %v168, %v104
    %v170 = vsub.f32 1.0, %v169
    %v171 = vmul.f32 %v166, %v170
    %s172 = sld [smem:[#allocation4 + $0xa]]
    %v173 = vstv %s172
    %v174 = vmul.f32 %v173, %v107
    %v175 = vsub.f32 1.0, %v174
    %v176 = vmul.f32 %v171, %v175
    %s177 = sld [smem:[#allocation4 + $0xb]]
    %v178 = vstv %s177
    %v179 = vmul.f32 %v178, %v110
    %v180 = vsub.f32 1.0, %v179
    %v181 = vmul.f32 %v176, %v180
    %s182 = sld [smem:[#allocation4 + $0xc]]
    %v183 = vstv %s182
    %v184 = vmul.f32 %v183, %v113
    %v185 = vsub.f32 1.0, %v184
    %v186 = vmul.f32 %v181, %v185
    %s187 = sld [smem:[#allocation4 + $0xd]]
    %v188 = vstv %s187
    %v189 = vmul.f32 %v188, %v116
    %v190 = vsub.f32 1.0, %v189
    %v191 = vmul.f32 %v186, %v190
    %s192 = sld [smem:[#allocation4 + $0xe]]
    %v193 = vstv %s192
    %v194 = vmul.f32 %v193, %v119
    %v195 = vsub.f32 1.0, %v194
    %v196 = vmul.f32 %v191, %v195
    %s197 = sld [smem:[#allocation4 + $0xf]]
    %v198 = vstv %s197
    %v199 = vmul.f32 %v198, %v122
    %v200 = vsub.f32 1.0, %v199
    %v201 = vmul.f32 %v196, %v200
    %v202 = vsub.f32 1.0, %v201
    %s203 = sld [smem:[#allocation4 + $0x10]]
    %v204 = vstv %s203
    %v205 = vmul.f32 %v204, %v101
    %v206 = vsub.f32 1.0, %v205
    %s207 = sld [smem:[#allocation4 + $0x11]]
    %v208 = vstv %s207
    %v209 = vmul.f32 %v208, %v104
    %v210 = vsub.f32 1.0, %v209
    %v211 = vmul.f32 %v206, %v210
    %s212 = sld [smem:[#allocation4 + $0x12]]
    %v213 = vstv %s212
    %v214 = vmul.f32 %v213, %v107
    %v215 = vsub.f32 1.0, %v214
    %v216 = vmul.f32 %v211, %v215
    %s217 = sld [smem:[#allocation4 + $0x13]]
    %v218 = vstv %s217
    %v219 = vmul.f32 %v218, %v110
    %v220 = vsub.f32 1.0, %v219
    %v221 = vmul.f32 %v216, %v220
    %s222 = sld [smem:[#allocation4 + $0x14]]
    %v223 = vstv %s222
    %v224 = vmul.f32 %v223, %v113
    %v225 = vsub.f32 1.0, %v224
    %v226 = vmul.f32 %v221, %v225
    %s227 = sld [smem:[#allocation4 + $0x15]]
    %v228 = vstv %s227
    %v229 = vmul.f32 %v228, %v116
    %v230 = vsub.f32 1.0, %v229
    %v231 = vmul.f32 %v226, %v230
    %s232 = sld [smem:[#allocation4 + $0x16]]
    %v233 = vstv %s232
    %v234 = vmul.f32 %v233, %v119
    %v235 = vsub.f32 1.0, %v234
    %v236 = vmul.f32 %v231, %v235
    %s237 = sld [smem:[#allocation4 + $0x17]]
    %v238 = vstv %s237
    %v239 = vmul.f32 %v238, %v122
    %v240 = vsub.f32 1.0, %v239
    %v241 = vmul.f32 %v236, %v240
    %v242 = vsub.f32 1.0, %v241
    %s243 = sld [smem:[#allocation4 + $0x18]]
    %v244 = vstv %s243
    %v245 = vmul.f32 %v244, %v101
    %v246 = vsub.f32 1.0, %v245
    %s247 = sld [smem:[#allocation4 + $0x19]]
    %v248 = vstv %s247
    %v249 = vmul.f32 %v248, %v104
    %v250 = vsub.f32 1.0, %v249
    %v251 = vmul.f32 %v246, %v250
    %s252 = sld [smem:[#allocation4 + $0x1a]]
    %v253 = vstv %s252
    %v254 = vmul.f32 %v253, %v107
    %v255 = vsub.f32 1.0, %v254
    %v256 = vmul.f32 %v251, %v255
    %s257 = sld [smem:[#allocation4 + $0x1b]]
    %v258 = vstv %s257
    %v259 = vmul.f32 %v258, %v110
    %v260 = vsub.f32 1.0, %v259
    %v261 = vmul.f32 %v256, %v260
    %s262 = sld [smem:[#allocation4 + $0x1c]]
    %v263 = vstv %s262
    %v264 = vmul.f32 %v263, %v113
    %v265 = vsub.f32 1.0, %v264
    %v266 = vmul.f32 %v261, %v265
    %s267 = sld [smem:[#allocation4 + $0x1d]]
    %v268 = vstv %s267
    %v269 = vmul.f32 %v268, %v116
    %v270 = vsub.f32 1.0, %v269
    %v271 = vmul.f32 %v266, %v270
    %s272 = sld [smem:[#allocation4 + $0x1e]]
    %v273 = vstv %s272
    %v274 = vmul.f32 %v273, %v119
    %v275 = vsub.f32 1.0, %v274
    %v276 = vmul.f32 %v271, %v275
    %s277 = sld [smem:[#allocation4 + $0x1f]]
    %v278 = vstv %s277
    %v279 = vmul.f32 %v278, %v122
    %v280 = vsub.f32 1.0, %v279
    %v281 = vmul.f32 %v276, %v280
    %v282 = vsub.f32 1.0, %v281
    %v283 = vmul.f32 %v162, %v202
    %v284 = vmul.f32 %v283, %v242
    %v285 = vmul.f32 %v284, %v282
    %s286 = sld [smem:[#allocation6]]
    %v287 = vstv %s286
    %v288 = vmul.f32 %v287, %v285
    %s289 = sld [smem:[#allocation6 + $0x1]]
    %v290 = vstv %s289
    %v291 = vmul.f32 %v290, %v285
    %s292 = sld [smem:[#allocation6 + $0x2]]
    %v293 = vstv %s292
    %v294 = vmul.f32 %v293, %v285
    %s295 = sld [smem:[#allocation6 + $0x3]]
    %v296 = vstv %s295
    %v297 = vmul.f32 %v296, %v285
    %s298 = sld [smem:[#allocation6 + $0x4]]
    %v299 = vstv %s298
    %v300 = vmul.f32 %v299, %v285
    %s301 = sld [smem:[#allocation6 + $0x5]]
    %v302 = vstv %s301
    %v303 = vmul.f32 %v302, %v285
    %s304 = sld [smem:[#allocation6 + $0x6]]
    %v305 = vstv %s304
    %v306 = vmul.f32 %v305, %v285
    %s307 = sld [smem:[#allocation6 + $0x7]]
    %v308 = vstv %s307
    %v309 = vmul.f32 %v308, %v285
    %s310 = sld [smem:[#allocation6 + $0x8]]
    %v311 = vstv %s310
    %v312 = vmul.f32 %v311, %v285
    %s313 = sld [smem:[#allocation6 + $0x9]]
    %v314 = vstv %s313
    %v315 = vmul.f32 %v314, %v285
    %s316 = sld [smem:[#allocation6 + $0xa]]
    %v317 = vstv %s316
    %v318 = vmul.f32 %v317, %v285
    %s319 = sld [smem:[#allocation6 + $0xb]]
    %v320 = vstv %s319
    %v321 = vmul.f32 %v320, %v285
    %s322 = sld [smem:[#allocation6 + $0xc]]
    %v323 = vstv %s322
    %v324 = vmul.f32 %v323, %v285
    %s325 = sld [smem:[#allocation6 + $0xd]]
    %v326 = vstv %s325
    %v327 = vmul.f32 %v326, %v285
    %s328 = sld [smem:[#allocation6 + $0xe]]
    %v329 = vstv %s328
    %v330 = vmul.f32 %v329, %v285
    %s331 = sld [smem:[#allocation6 + $0xf]]
    %v332 = vstv %s331
    %v333 = vmul.f32 %v332, %v285
    %334 = vst [vmem:[%s4] sm:$0x1] %v288
    %s335 = scalar_lea.vmem %s4, 1
    %336 = vst [vmem:[%s335] sm:$0x1] %v291
    %s337 = scalar_lea.vmem %s4, 2
    %338 = vst [vmem:[%s337] sm:$0x1] %v294
    %s339 = scalar_lea.vmem %s4, 3
    %340 = vst [vmem:[%s339] sm:$0x1] %v297
    %s341 = scalar_lea.vmem %s4, 4
    %342 = vst [vmem:[%s341] sm:$0x1] %v300
    %s343 = scalar_lea.vmem %s4, 5
    %344 = vst [vmem:[%s343] sm:$0x1] %v303
    %s345 = scalar_lea.vmem %s4, 6
    %346 = vst [vmem:[%s345] sm:$0x1] %v306
    %s347 = scalar_lea.vmem %s4, 7
    %348 = vst [vmem:[%s347] sm:$0x1] %v309
    %s349 = scalar_lea.vmem %s4, 8
    %350 = vst [vmem:[%s349] sm:$0x1] %v312
    %s351 = scalar_lea.vmem %s4, 9
    %352 = vst [vmem:[%s351] sm:$0x1] %v315
    %s353 = scalar_lea.vmem %s4, 10
    %354 = vst [vmem:[%s353] sm:$0x1] %v318
    %s355 = scalar_lea.vmem %s4, 11
    %356 = vst [vmem:[%s355] sm:$0x1] %v321
    %s357 = scalar_lea.vmem %s4, 12
    %358 = vst [vmem:[%s357] sm:$0x1] %v324
    %s359 = scalar_lea.vmem %s4, 13
    %360 = vst [vmem:[%s359] sm:$0x1] %v327
    %s361 = scalar_lea.vmem %s4, 14
    %362 = vst [vmem:[%s361] sm:$0x1] %v330
    %s363 = scalar_lea.vmem %s4, 15
    %364 = vst [vmem:[%s363] sm:$0x1] %v333
    // Predicated region
    $region30: #{forward.1} parent=1 // pred_check
      _
    $region31: #{forward.1} parent=1 // pred_check_branch
      %366 = sbr.rel (0) target = $region33
    $region32: #{forward.1} parent=1 // pred_region
      _
    $region33: #{forward.1} parent=1 // pred_fallthru
      _
    // Predicated region
    $region34: #{forward.1} parent=1 // pred_check
      _
    $region35: #{forward.1} parent=1 // pred_check_branch
      %368 = sbr.rel (0) target = $region37
    $region36: #{forward.1} parent=1 // pred_region
      _
    $region37: #{forward.1} parent=1 // pred_fallthru
      _
    %369 = vsyncpa [#allocation3], 1
    %370 = vsyncpa [#allocation5], 1

</llo_original>
